<compile_context>
chip_gen: v5e
topology: v5e:2x2
jax: 0.10.0
libtpu: 0.0.40
codegen_flags: <defaults>
</compile_context>

<pallas_src>
import jax
import jax.numpy as jnp
from jax import lax
from jax.experimental import pallas as pl
from jax.experimental.pallas import tpu as pltpu

# ----------------------------- config ---------------------------------------
BATCH = 2
SEQ = 8
HIDDEN = 32
NUM_HEADS = 4
HEAD_DIM = HIDDEN // NUM_HEADS
INTERMEDIATE = 4 * HIDDEN          # 128, keeps BERT's 4x FFN ratio
NUM_LAYERS = 9                     # encoder layers 4..12 of bert-base
NUM_CLASSES = 2
LN_EPS = 1e-12
BS = BATCH * SEQ


# --------------------------- kernel helpers ----------------------------------
def _gelu_tanh(x):
    # tanh-approximate GELU: the tanh hits the otherwise-idle EUP slot instead
    # of a long erf VPU polynomial.  ~1e-4 of exact erf GELU at these
    # activation magnitudes (well inside the 5e-3 check).
    c = jnp.float32(0.7978845608028654)      # sqrt(2/pi)
    return 0.5 * x * (1.0 + jnp.tanh(c * (x + jnp.float32(0.044715) * x * x * x)))


def _layer_norm(x, gamma, beta):
    # E[x^2] - mu^2 form: the two lane reductions are independent and issue
    # back-to-back through the XLU FIFO (shorter dependent chain than
    # mean -> (x - mu)^2 -> mean).
    mu = jnp.mean(x, axis=-1, keepdims=True)
    ms = jnp.mean(x * x, axis=-1, keepdims=True)
    var = ms - mu * mu
    return (x - mu) * lax.rsqrt(var + LN_EPS) * gamma + beta


# ------------------------------ Pallas kernel --------------------------------
def classifier_kernel(x_ref, wqkv_ref, wo_ref, wi_ref, wo2_ref, vec_ref,
                      whead_ref, hvec_ref, out_ref):
    H, NH, HD = HIDDEN, NUM_HEADS, HEAD_DIM
    scale = jnp.float32(1.0 / (HD ** 0.5))

    def layer_body(l, x):
        # Dynamic first-axis Ref indexing: one VMEM load per packed slab.
        wqkv = wqkv_ref[l]                              # [H, 3H]
        wo = wo_ref[l]                                  # [H, H]
        wi = wi_ref[l]                                  # [H, I]
        wo2 = wo2_ref[l]                                # [I, H]
        vecs = vec_ref[l]                               # [8, I] packed vectors

        bqkv = vecs[0:1, :3 * H]                        # [1, 3H]
        bo = vecs[1:2, :H]
        g1 = vecs[2:3, :H]
        b1 = vecs[3:4, :H]
        bi = vecs[4:5, :]                               # [1, I]
        bo2 = vecs[5:6, :H]
        g2 = vecs[6:7, :H]
        b2 = vecs[7:8, :H]

        # --- fused Q|K|V projection: one MXU push instead of three ---
        qkv = jnp.dot(x, wqkv, preferred_element_type=jnp.float32) + bqkv
        qkv3 = qkv.reshape(BATCH, SEQ, 3 * H)           # [B, S, 3H]

        # --- head-fused attention ---
        # Fold (head, batch) into a single leading batch axis of size NH*B so
        # the scores, the softmax and the context are ONE batched einsum each
        # (single-batch-dim dot_general, proven lowering) instead of a
        # 4-iteration per-head loop.  The per-head lane slices and the
        # leading-axis concat are cheap layout moves on sub-vreg data.
        qh = jnp.concatenate(
            [qkv3[:, :, h * HD:(h + 1) * HD] for h in range(NH)], axis=0)
        kh = jnp.concatenate(
            [qkv3[:, :, H + h * HD:H + (h + 1) * HD] for h in range(NH)], axis=0)
        vh = jnp.concatenate(
            [qkv3[:, :, 2 * H + h * HD:2 * H + (h + 1) * HD] for h in range(NH)],
            axis=0)                                     # each [NH*B, S, HD]

        s = jnp.einsum('bqd,bkd->bqk', qh, kh,
                       preferred_element_type=jnp.float32) * scale
        s = s - jnp.max(s, axis=-1, keepdims=True)
        e = jnp.exp(s)
        p = e * pl.reciprocal(jnp.sum(e, axis=-1, keepdims=True), approx=True)
        ctx = jnp.einsum('bqk,bkd->bqd', p, vh,
                         preferred_element_type=jnp.float32)    # [NH*B, S, HD]

        # Merge heads back to lane-major [B*S, H]; ONE output projection matmul.
        ctx_m = jnp.concatenate(
            [ctx[h * BATCH:(h + 1) * BATCH] for h in range(NH)], axis=-1)
        attn = jnp.dot(ctx_m.reshape(BS, H), wo,
                       preferred_element_type=jnp.float32) + bo
        # TODO(synk): nn.Dropout after the attention output is identity (eval mode).
        h1 = _layer_norm(attn + x, g1, b1)

        # --- feed-forward ---
        inter = _gelu_tanh(
            jnp.dot(h1, wi, preferred_element_type=jnp.float32) + bi)
        ffn = jnp.dot(inter, wo2, preferred_element_type=jnp.float32) + bo2
        # TODO(synk): nn.Dropout after the FFN output is identity (eval mode).
        return _layer_norm(ffn + h1, g2, b2)

    x = x_ref[...].reshape(BS, H)                       # [B*S, H], f32
    # fori_loop (not a 9x-unrolled Python loop) bounds vreg live ranges and
    # keeps the instruction stream ~9x smaller at identical work.
    x = lax.fori_loop(0, NUM_LAYERS, layer_body, x)

    # --- BERT pooler: first token -> Linear -> tanh ---
    first = x.reshape(BATCH, SEQ, H)[:, 0:1, :].reshape(BATCH, H)   # [B, H]
    w_pool = whead_ref[0]                               # [H, H]
    w_hid = whead_ref[1]                                # [H, H]
    w_out = whead_ref[2]                                # [H, H] (cols >= 2 zero)
    b_pool = hvec_ref[0:1, :]                           # [1, H]
    b_hid = hvec_ref[1:2, :]
    b_out = hvec_ref[2:3, :]                            # padded to H with zeros

    pooled = jnp.tanh(
        jnp.dot(first, w_pool, preferred_element_type=jnp.float32) + b_pool)
    hidden = jnp.maximum(
        jnp.dot(pooled, w_hid, preferred_element_type=jnp.float32) + b_hid, 0.0)
    # TODO(synk): nn.Dropout(0.1) before the output Linear is identity (eval mode).
    logits = jnp.dot(hidden, w_out, preferred_element_type=jnp.float32) + b_out
    out_ref[...] = logits[:, :NUM_CLASSES]


# ------------------------------ wrapper --------------------------------------
def hs_addn_classifier_1(x, packed):
    # Single gridless pallas_call: the whole (tiny) problem is one program and
    # every input (well under 1 MiB total) lives in VMEM for the full kernel,
    # so no vmem_limit override is needed.
    # TODO(synk): on v7x (2 TensorCores) a grid=(BATCH,) with
    #   dimension_semantics=("parallel",) and weight index_maps returning block 0
    #   could split the two independent batch elements across cores; left
    #   gridless since v5e/v6e have one TC and a grid only adds serial overhead.
    # TODO(synk): optionally cast the weight slabs to bf16 wrapper-side on
    #   v6e/v7x to halve the (already tiny) weight DMA; kept f32 because this
    #   kernel is op-count/latency bound, not bandwidth bound.
    return pl.pallas_call(
        classifier_kernel,
        out_shape=jax.ShapeDtypeStruct((BATCH, NUM_CLASSES), jnp.float32),
    )(x, packed["wqkv"], packed["wo"], packed["wi"], packed["wo2"],
      packed["vec"], packed["whead"], packed["hvec"])


# --------------------------- parameter init ----------------------------------
def init_layer_params(key):
    ks = jax.random.split(key, 16)
    std = 0.02

    def w(k, shape):
        return (std * jax.random.normal(k, shape)).astype(jnp.float32)

    return {
        "wq": w(ks[0], (HIDDEN, HIDDEN)), "bq": w(ks[1], (HIDDEN,)),
        "wk": w(ks[2], (HIDDEN, HIDDEN)), "bk": w(ks[3], (HIDDEN,)),
        "wv": w(ks[4], (HIDDEN, HIDDEN)), "bv": w(ks[5], (HIDDEN,)),
        "wo": w(ks[6], (HIDDEN, HIDDEN)), "bo": w(ks[7], (HIDDEN,)),
        "g1": 1.0 + w(ks[8], (HIDDEN,)), "b1": w(ks[9], (HIDDEN,)),
        "wi": w(ks[10], (HIDDEN, INTERMEDIATE)), "bi": w(ks[11], (INTERMEDIATE,)),
        "wo2": w(ks[12], (INTERMEDIATE, HIDDEN)), "bo2": w(ks[13], (HIDDEN,)),
        "g2": 1.0 + w(ks[14], (HIDDEN,)), "b2": w(ks[15], (HIDDEN,)),
    }


def init_head_params(key):
    ks = jax.random.split(key, 6)
    std = 0.02

    def w(k, shape):
        return (std * jax.random.normal(k, shape)).astype(jnp.float32)

    return {
        "w_pool": w(ks[0], (HIDDEN, HIDDEN)), "b_pool": w(ks[1], (HIDDEN,)),
        "w_hid": w(ks[2], (HIDDEN, HIDDEN)), "b_hid": w(ks[3], (HIDDEN,)),
        "w_out": w(ks[4], (HIDDEN, NUM_CLASSES)), "b_out": w(ks[5], (NUM_CLASSES,)),
    }


def pack_params(layer_params, head_params):
    """Stack per-layer params into a few dense arrays (few kernel inputs)."""
    def pad_row(v):
        return jnp.pad(v, (0, INTERMEDIATE - v.shape[0]))

    wqkv, wo, wi, wo2, vec = [], [], [], [], []
    for p in layer_params:
        wqkv.append(jnp.concatenate([p["wq"], p["wk"], p["wv"]], axis=1))
        wo.append(p["wo"])
        wi.append(p["wi"])
        wo2.append(p["wo2"])
        rows = [
            pad_row(jnp.concatenate([p["bq"], p["bk"], p["bv"]])),  # row 0
            pad_row(p["bo"]), pad_row(p["g1"]), pad_row(p["b1"]),   # rows 1-3
            p["bi"],                                                # row 4
            pad_row(p["bo2"]), pad_row(p["g2"]), pad_row(p["b2"]),  # rows 5-7
        ]
        vec.append(jnp.stack(rows))

    h = head_params
    w_out_pad = jnp.zeros((HIDDEN, HIDDEN), jnp.float32).at[:, :NUM_CLASSES].set(
        h["w_out"])
    b_out_pad = jnp.zeros((HIDDEN,), jnp.float32).at[:NUM_CLASSES].set(h["b_out"])
    return {
        "wqkv": jnp.stack(wqkv),            # [L, H, 3H]
        "wo": jnp.stack(wo),                # [L, H, H]
        "wi": jnp.stack(wi),                # [L, H, I]
        "wo2": jnp.stack(wo2),              # [L, I, H]
        "vec": jnp.stack(vec),              # [L, 8, I]
        "whead": jnp.stack([h["w_pool"], h["w_hid"], w_out_pad]),   # [3, H, H]
        "hvec": jnp.stack([h["b_pool"], h["b_hid"], b_out_pad]),    # [3, H]
    }


# ----------------------------- pure-JAX ref ----------------------------------
def _layer_norm_ref(x, gamma, beta):
    mu = jnp.mean(x, axis=-1, keepdims=True)
    var = jnp.mean((x - mu) * (x - mu), axis=-1, keepdims=True)
    return (x - mu) * lax.rsqrt(var + LN_EPS) * gamma + beta


def _bert_layer_ref(x, p):
    B, S, H = x.shape
    q = x @ p["wq"] + p["bq"]
    k = x @ p["wk"] + p["bk"]
    v = x @ p["wv"] + p["bv"]

    def split(t):
        return t.reshape(B, S, NUM_HEADS, HEAD_DIM).transpose(0, 2, 1, 3)

    qh, kh, vh = split(q), split(k), split(v)
    s = jnp.einsum("bhqd,bhkd->bhqk", qh, kh) / (HEAD_DIM ** 0.5)
    a = jax.nn.softmax(s, axis=-1)
    ctx = jnp.einsum("bhqk,bhkd->bhqd", a, vh).transpose(0, 2, 1, 3).reshape(B, S, H)
    attn = ctx @ p["wo"] + p["bo"]
    h1 = _layer_norm_ref(attn + x, p["g1"], p["b1"])
    pre = h1 @ p["wi"] + p["bi"]
    inter = 0.5 * pre * (1.0 + lax.erf(pre * 0.7071067811865476))   # exact GELU
    ffn = inter @ p["wo2"] + p["bo2"]
    return _layer_norm_ref(ffn + h1, p["g2"], p["b2"])


def classifier_ref(x, layer_params, head):
    for p in layer_params:
        x = _bert_layer_ref(x, p)
    first = x[:, 0, :]
    pooled = jnp.tanh(first @ head["w_pool"] + head["b_pool"])
    hidden = jax.nn.relu(pooled @ head["w_hid"] + head["b_hid"])
    return hidden @ head["w_out"] + head["b_out"]


# --------------------------------- main ---------------------------------------
if __name__ == "__main__":
    root = jax.random.PRNGKey(0)
    kx, kl, kh = jax.random.split(root, 3)
    x = jax.random.normal(kx, (BATCH, SEQ, HIDDEN), dtype=jnp.float32)

    layer_keys = jax.random.split(kl, NUM_LAYERS)
    layer_params = [init_layer_params(k) for k in layer_keys]
    head_params = init_head_params(kh)
    packed = pack_params(layer_params, head_params)

    out = hs_addn_classifier_1(x, packed)
    out = jax.block_until_ready(out)

    ref = classifier_ref(x, layer_params, head_params)
    assert out.shape == (BATCH, NUM_CLASSES)
    assert bool(jnp.all(jnp.isfinite(out)))
    max_err = float(jnp.max(jnp.abs(out - ref)))
    assert jnp.allclose(out, ref, atol=5e-3, rtol=5e-3), max_err

    print("KERNEL_OK")
</pallas_src>

<mosaic_0001>
module attributes {stable_mosaic.version = 11 : i64} {
  func.func @classifier_kernel(%arg0: memref<2x8x32xf32, #tpu.memory_space<vmem>>, %arg1: memref<9x32x96xf32, #tpu.memory_space<vmem>>, %arg2: memref<9x32x32xf32, #tpu.memory_space<vmem>>, %arg3: memref<9x32x128xf32, #tpu.memory_space<vmem>>, %arg4: memref<9x128x32xf32, #tpu.memory_space<vmem>>, %arg5: memref<9x8x128xf32, #tpu.memory_space<vmem>>, %arg6: memref<3x32x32xf32, #tpu.memory_space<vmem>>, %arg7: memref<3x32xf32, #tpu.memory_space<vmem>>, %arg8: memref<2x2xf32, #tpu.memory_space<vmem>>) attributes {dimension_semantics = [], scalar_prefetch = 0 : i64, scratch_operands = 0 : i64, tpu.core_type = #tpu.core_type<tc>} {
    %c0 = arith.constant 0 : index
    %c0_0 = arith.constant 0 : index
    %c0_1 = arith.constant 0 : index
    %0 = vector.load %arg0[%c0, %c0_0, %c0_1] : memref<2x8x32xf32, #tpu.memory_space<vmem>>, vector<2x8x32xf32>
    %1 = vector.shape_cast %0 : vector<2x8x32xf32> to vector<16x32xf32>
    %cst = arith.constant 0.353553385 : f32
    %c0_i32 = arith.constant 0 : i32
    %c9_i32 = arith.constant 9 : i32
    %2 = arith.addi %c0_i32, %c9_i32 : i32
    %c1_i32 = arith.constant 1 : i32
    %3 = scf.for %arg9 = %c0_i32 to %2 step %c1_i32 iter_args(%arg10 = %1) -> (vector<16x32xf32>)  : i32 {
      %30 = arith.index_cast %arg9 : i32 to index
      %c0_22 = arith.constant 0 : index
      %c0_23 = arith.constant 0 : index
      %31 = vector.load %arg1[%30, %c0_22, %c0_23] : memref<9x32x96xf32, #tpu.memory_space<vmem>>, vector<1x32x96xf32>
      %32 = vector.shape_cast %31 : vector<1x32x96xf32> to vector<32x96xf32>
      %33 = arith.index_cast %arg9 : i32 to index
      %c0_24 = arith.constant 0 : index
      %c0_25 = arith.constant 0 : index
      %34 = vector.load %arg2[%33, %c0_24, %c0_25] : memref<9x32x32xf32, #tpu.memory_space<vmem>>, vector<1x32x32xf32>
      %35 = vector.shape_cast %34 : vector<1x32x32xf32> to vector<32x32xf32>
      %36 = arith.index_cast %arg9 : i32 to index
      %c0_26 = arith.constant 0 : index
      %c0_27 = arith.constant 0 : index
      %37 = vector.load %arg3[%36, %c0_26, %c0_27] : memref<9x32x128xf32, #tpu.memory_space<vmem>>, vector<1x32x128xf32>
      %38 = vector.shape_cast %37 : vector<1x32x128xf32> to vector<32x128xf32>
      %39 = arith.index_cast %arg9 : i32 to index
      %c0_28 = arith.constant 0 : index
      %c0_29 = arith.constant 0 : index
      %40 = vector.load %arg4[%39, %c0_28, %c0_29] : memref<9x128x32xf32, #tpu.memory_space<vmem>>, vector<1x128x32xf32>
      %41 = vector.shape_cast %40 : vector<1x128x32xf32> to vector<128x32xf32>
      %42 = arith.index_cast %arg9 : i32 to index
      %c0_30 = arith.constant 0 : index
      %c0_31 = arith.constant 0 : index
      %43 = vector.load %arg5[%42, %c0_30, %c0_31] : memref<9x8x128xf32, #tpu.memory_space<vmem>>, vector<1x8x128xf32>
      %44 = vector.shape_cast %43 : vector<1x8x128xf32> to vector<8x128xf32>
      %45 = vector.extract_strided_slice %44 {offsets = [0, 0], sizes = [1, 96], strides = [1, 1]} : vector<8x128xf32> to vector<1x96xf32>
      %46 = vector.extract_strided_slice %44 {offsets = [1, 0], sizes = [1, 32], strides = [1, 1]} : vector<8x128xf32> to vector<1x32xf32>
      %47 = vector.extract_strided_slice %44 {offsets = [2, 0], sizes = [1, 32], strides = [1, 1]} : vector<8x128xf32> to vector<1x32xf32>
      %48 = vector.extract_strided_slice %44 {offsets = [3, 0], sizes = [1, 32], strides = [1, 1]} : vector<8x128xf32> to vector<1x32xf32>
      %49 = vector.extract_strided_slice %44 {offsets = [4, 0], sizes = [1, 128], strides = [1, 1]} : vector<8x128xf32> to vector<1x128xf32>
      %50 = vector.extract_strided_slice %44 {offsets = [5, 0], sizes = [1, 32], strides = [1, 1]} : vector<8x128xf32> to vector<1x32xf32>
      %51 = vector.extract_strided_slice %44 {offsets = [6, 0], sizes = [1, 32], strides = [1, 1]} : vector<8x128xf32> to vector<1x32xf32>
      %52 = vector.extract_strided_slice %44 {offsets = [7, 0], sizes = [1, 32], strides = [1, 1]} : vector<8x128xf32> to vector<1x32xf32>
      %cst_32 = arith.constant dense<0.000000e+00> : vector<16x96xf32>
      %53 = tpu.matmul %arg10, %32, %cst_32 {dimension_numbers = #tpu.dot_dimension_numbers<[1], [0], [0], [1], [0, 0, 1, 1], [], []>} : vector<16x32xf32>, vector<32x96xf32>, vector<16x96xf32> -> vector<16x96xf32>
      %54 = vector.broadcast %45 : vector<1x96xf32> to vector<16x96xf32>
      %55 = arith.addf %53, %54 : vector<16x96xf32>
      %56 = vector.shape_cast %55 : vector<16x96xf32> to vector<2x8x96xf32>
      %57 = vector.extract_strided_slice %56 {offsets = [0, 0, 0], sizes = [2, 8, 8], strides = [1, 1, 1]} : vector<2x8x96xf32> to vector<2x8x8xf32>
      %58 = vector.extract_strided_slice %56 {offsets = [0, 0, 8], sizes = [2, 8, 8], strides = [1, 1, 1]} : vector<2x8x96xf32> to vector<2x8x8xf32>
      %59 = vector.extract_strided_slice %56 {offsets = [0, 0, 16], sizes = [2, 8, 8], strides = [1, 1, 1]} : vector<2x8x96xf32> to vector<2x8x8xf32>
      %60 = vector.extract_strided_slice %56 {offsets = [0, 0, 24], sizes = [2, 8, 8], strides = [1, 1, 1]} : vector<2x8x96xf32> to vector<2x8x8xf32>
      %61 = tpu.concatenate %57, %58, %59, %60 in 0 : vector<2x8x8xf32>, vector<2x8x8xf32>, vector<2x8x8xf32>, vector<2x8x8xf32> -> vector<8x8x8xf32>
      %62 = vector.extract_strided_slice %56 {offsets = [0, 0, 32], sizes = [2, 8, 8], strides = [1, 1, 1]} : vector<2x8x96xf32> to vector<2x8x8xf32>
      %63 = vector.extract_strided_slice %56 {offsets = [0, 0, 40], sizes = [2, 8, 8], strides = [1, 1, 1]} : vector<2x8x96xf32> to vector<2x8x8xf32>
      %64 = vector.extract_strided_slice %56 {offsets = [0, 0, 48], sizes = [2, 8, 8], strides = [1, 1, 1]} : vector<2x8x96xf32> to vector<2x8x8xf32>
      %65 = vector.extract_strided_slice %56 {offsets = [0, 0, 56], sizes = [2, 8, 8], strides = [1, 1, 1]} : vector<2x8x96xf32> to vector<2x8x8xf32>
      %66 = tpu.concatenate %62, %63, %64, %65 in 0 : vector<2x8x8xf32>, vector<2x8x8xf32>, vector<2x8x8xf32>, vector<2x8x8xf32> -> vector<8x8x8xf32>
      %67 = vector.extract_strided_slice %56 {offsets = [0, 0, 64], sizes = [2, 8, 8], strides = [1, 1, 1]} : vector<2x8x96xf32> to vector<2x8x8xf32>
      %68 = vector.extract_strided_slice %56 {offsets = [0, 0, 72], sizes = [2, 8, 8], strides = [1, 1, 1]} : vector<2x8x96xf32> to vector<2x8x8xf32>
      %69 = vector.extract_strided_slice %56 {offsets = [0, 0, 80], sizes = [2, 8, 8], strides = [1, 1, 1]} : vector<2x8x96xf32> to vector<2x8x8xf32>
      %70 = vector.extract_strided_slice %56 {offsets = [0, 0, 88], sizes = [2, 8, 8], strides = [1, 1, 1]} : vector<2x8x96xf32> to vector<2x8x8xf32>
      %71 = tpu.concatenate %67, %68, %69, %70 in 0 : vector<2x8x8xf32>, vector<2x8x8xf32>, vector<2x8x8xf32>, vector<2x8x8xf32> -> vector<8x8x8xf32>
      "tpu.trace_start"() <{level = 10 : i32, message = "bqd,bkd->bqk"}> : () -> ()
      %cst_33 = arith.constant dense<0.000000e+00> : vector<8x8x8xf32>
      %72 = tpu.matmul %61, %66, %cst_33 {dimension_numbers = #tpu.dot_dimension_numbers<[2], [2], [1], [1], [0, 0, 0, 1, 1, 1], [0], [0]>} : vector<8x8x8xf32>, vector<8x8x8xf32>, vector<8x8x8xf32> -> vector<8x8x8xf32>
      "tpu.trace_stop"() : () -> ()
      %73 = vector.broadcast %cst : f32 to vector<8x8x8xf32>
      %74 = arith.mulf %72, %73 : vector<8x8x8xf32>
      %cst_34 = arith.constant dense<0xFF800000> : vector<8x8xf32>
      %75 = vector.multi_reduction <maximumf>, %74, %cst_34 [2] : vector<8x8x8xf32> to vector<8x8xf32>
      %76 = vector.shape_cast %75 : vector<8x8xf32> to vector<8x8x1xf32>
      %77 = vector.broadcast %76 : vector<8x8x1xf32> to vector<8x8x8xf32>
      %78 = arith.subf %74, %77 : vector<8x8x8xf32>
      %79 = math.exp %78 : vector<8x8x8xf32>
      %cst_35 = arith.constant dense<0.000000e+00> : vector<8x8xf32>
      %80 = vector.multi_reduction <add>, %79, %cst_35 [2] : vector<8x8x8xf32> to vector<8x8xf32>
      %81 = vector.shape_cast %80 : vector<8x8xf32> to vector<8x8x1xf32>
      %82 = tpu.reciprocal %81 {approx = true} : vector<8x8x1xf32> -> vector<8x8x1xf32>
      %83 = vector.broadcast %82 : vector<8x8x1xf32> to vector<8x8x8xf32>
      %84 = arith.mulf %79, %83 : vector<8x8x8xf32>
      "tpu.trace_start"() <{level = 10 : i32, message = "bqk,bkd->bqd"}> : () -> ()
      %cst_36 = arith.constant dense<0.000000e+00> : vector<8x8x8xf32>
      %85 = tpu.matmul %84, %71, %cst_36 {dimension_numbers = #tpu.dot_dimension_numbers<[2], [1], [1], [2], [0, 0, 0, 1, 1, 2], [0], [0]>} : vector<8x8x8xf32>, vector<8x8x8xf32>, vector<8x8x8xf32> -> vector<8x8x8xf32>
      "tpu.trace_stop"() : () -> ()
      %86 = vector.extract_strided_slice %85 {offsets = [0, 0, 0], sizes = [2, 8, 8], strides = [1, 1, 1]} : vector<8x8x8xf32> to vector<2x8x8xf32>
      %87 = vector.extract_strided_slice %85 {offsets = [2, 0, 0], sizes = [2, 8, 8], strides = [1, 1, 1]} : vector<8x8x8xf32> to vector<2x8x8xf32>
      %88 = vector.extract_strided_slice %85 {offsets = [4, 0, 0], sizes = [2, 8, 8], strides = [1, 1, 1]} : vector<8x8x8xf32> to vector<2x8x8xf32>
      %89 = vector.extract_strided_slice %85 {offsets = [6, 0, 0], sizes = [2, 8, 8], strides = [1, 1, 1]} : vector<8x8x8xf32> to vector<2x8x8xf32>
      %90 = tpu.concatenate %86, %87, %88, %89 in 2 : vector<2x8x8xf32>, vector<2x8x8xf32>, vector<2x8x8xf32>, vector<2x8x8xf32> -> vector<2x8x32xf32>
      %91 = vector.shape_cast %90 : vector<2x8x32xf32> to vector<16x32xf32>
      %cst_37 = arith.constant dense<0.000000e+00> : vector<16x32xf32>
      %92 = tpu.matmul %91, %35, %cst_37 {dimension_numbers = #tpu.dot_dimension_numbers<[1], [0], [0], [1], [0, 0, 1, 1], [], []>} : vector<16x32xf32>, vector<32x32xf32>, vector<16x32xf32> -> vector<16x32xf32>
      %93 = vector.broadcast %46 : vector<1x32xf32> to vector<16x32xf32>
      %94 = arith.addf %92, %93 : vector<16x32xf32>
      %95 = arith.addf %94, %arg10 : vector<16x32xf32>
      %cst_38 = arith.constant dense<0.000000e+00> : vector<16xf32>
      %96 = vector.multi_reduction <add>, %95, %cst_38 [1] : vector<16x32xf32> to vector<16xf32>
      %97 = vector.shape_cast %96 : vector<16xf32> to vector<16x1xf32>
      %cst_39 = arith.constant 3.200000e+01 : f32
      %98 = vector.broadcast %cst_39 : f32 to vector<16x1xf32>
      %99 = arith.divf %97, %98 : vector<16x1xf32>
      %100 = arith.mulf %95, %95 : vector<16x32xf32>
      %cst_40 = arith.constant dense<0.000000e+00> : vector<16xf32>
      %101 = vector.multi_reduction <add>, %100, %cst_40 [1] : vector<16x32xf32> to vector<16xf32>
      %102 = vector.shape_cast %101 : vector<16xf32> to vector<16x1xf32>
      %cst_41 = arith.constant 3.200000e+01 : f32
      %103 = vector.broadcast %cst_41 : f32 to vector<16x1xf32>
      %104 = arith.divf %102, %103 : vector<16x1xf32>
      %105 = arith.mulf %99, %99 : vector<16x1xf32>
      %106 = arith.subf %104, %105 : vector<16x1xf32>
      %107 = vector.broadcast %99 : vector<16x1xf32> to vector<16x32xf32>
      %108 = arith.subf %95, %107 : vector<16x32xf32>
      %cst_42 = arith.constant 9.99999996E-13 : f32
      %109 = vector.broadcast %cst_42 : f32 to vector<16x1xf32>
      %110 = arith.addf %106, %109 : vector<16x1xf32>
      %111 = math.rsqrt %110 : vector<16x1xf32>
      %112 = vector.broadcast %111 : vector<16x1xf32> to vector<16x32xf32>
      %113 = arith.mulf %108, %112 : vector<16x32xf32>
      %114 = vector.broadcast %47 : vector<1x32xf32> to vector<16x32xf32>
      %115 = arith.mulf %113, %114 : vector<16x32xf32>
      %116 = vector.broadcast %48 : vector<1x32xf32> to vector<16x32xf32>
      %117 = arith.addf %115, %116 : vector<16x32xf32>
      %cst_43 = arith.constant dense<0.000000e+00> : vector<16x128xf32>
      %118 = tpu.matmul %117, %38, %cst_43 {dimension_numbers = #tpu.dot_dimension_numbers<[1], [0], [0], [1], [0, 0, 1, 1], [], []>} : vector<16x32xf32>, vector<32x128xf32>, vector<16x128xf32> -> vector<16x128xf32>
      %119 = vector.broadcast %49 : vector<1x128xf32> to vector<16x128xf32>
      %120 = arith.addf %118, %119 : vector<16x128xf32>
      %cst_44 = arith.constant 5.000000e-01 : f32
      %121 = vector.broadcast %cst_44 : f32 to vector<16x128xf32>
      %122 = arith.mulf %121, %120 : vector<16x128xf32>
      %cst_45 = arith.constant 4.471500e-02 : f32
      %123 = vector.broadcast %cst_45 : f32 to vector<16x128xf32>
      %124 = arith.mulf %123, %120 : vector<16x128xf32>
      %125 = arith.mulf %124, %120 : vector<16x128xf32>
      %126 = arith.mulf %125, %120 : vector<16x128xf32>
      %127 = arith.addf %120, %126 : vector<16x128xf32>
      %cst_46 = arith.constant 0.797884583 : f32
      %128 = vector.broadcast %cst_46 : f32 to vector<16x128xf32>
      %129 = arith.mulf %128, %127 : vector<16x128xf32>
      %130 = math.tanh %129 : vector<16x128xf32>
      %cst_47 = arith.constant 1.000000e+00 : f32
      %131 = vector.broadcast %cst_47 : f32 to vector<16x128xf32>
      %132 = arith.addf %131, %130 : vector<16x128xf32>
      %133 = arith.mulf %122, %132 : vector<16x128xf32>
      %cst_48 = arith.constant dense<0.000000e+00> : vector<16x32xf32>
      %134 = tpu.matmul %133, %41, %cst_48 {dimension_numbers = #tpu.dot_dimension_numbers<[1], [0], [0], [1], [0, 0, 1, 1], [], []>} : vector<16x128xf32>, vector<128x32xf32>, vector<16x32xf32> -> vector<16x32xf32>
      %135 = vector.broadcast %50 : vector<1x32xf32> to vector<16x32xf32>
      %136 = arith.addf %134, %135 : vector<16x32xf32>
      %137 = arith.addf %136, %117 : vector<16x32xf32>
      %cst_49 = arith.constant dense<0.000000e+00> : vector<16xf32>
      %138 = vector.multi_reduction <add>, %137, %cst_49 [1] : vector<16x32xf32> to vector<16xf32>
      %139 = vector.shape_cast %138 : vector<16xf32> to vector<16x1xf32>
      %cst_50 = arith.constant 3.200000e+01 : f32
      %140 = vector.broadcast %cst_50 : f32 to vector<16x1xf32>
      %141 = arith.divf %139, %140 : vector<16x1xf32>
      %142 = arith.mulf %137, %137 : vector<16x32xf32>
      %cst_51 = arith.constant dense<0.000000e+00> : vector<16xf32>
      %143 = vector.multi_reduction <add>, %142, %cst_51 [1] : vector<16x32xf32> to vector<16xf32>
      %144 = vector.shape_cast %143 : vector<16xf32> to vector<16x1xf32>
      %cst_52 = arith.constant 3.200000e+01 : f32
      %145 = vector.broadcast %cst_52 : f32 to vector<16x1xf32>
      %146 = arith.divf %144, %145 : vector<16x1xf32>
      %147 = arith.mulf %141, %141 : vector<16x1xf32>
      %148 = arith.subf %146, %147 : vector<16x1xf32>
      %149 = vector.broadcast %141 : vector<16x1xf32> to vector<16x32xf32>
      %150 = arith.subf %137, %149 : vector<16x32xf32>
      %cst_53 = arith.constant 9.99999996E-13 : f32
      %151 = vector.broadcast %cst_53 : f32 to vector<16x1xf32>
      %152 = arith.addf %148, %151 : vector<16x1xf32>
      %153 = math.rsqrt %152 : vector<16x1xf32>
      %154 = vector.broadcast %153 : vector<16x1xf32> to vector<16x32xf32>
      %155 = arith.mulf %150, %154 : vector<16x32xf32>
      %156 = vector.broadcast %51 : vector<1x32xf32> to vector<16x32xf32>
      %157 = arith.mulf %155, %156 : vector<16x32xf32>
      %158 = vector.broadcast %52 : vector<1x32xf32> to vector<16x32xf32>
      %159 = arith.addf %157, %158 : vector<16x32xf32>
      scf.yield %159 : vector<16x32xf32>
    }
    %c9_i32_2 = arith.constant 9 : i32
    %4 = vector.shape_cast %3 : vector<16x32xf32> to vector<2x8x32xf32>
    %5 = vector.extract_strided_slice %4 {offsets = [0, 0, 0], sizes = [2, 1, 32], strides = [1, 1, 1]} : vector<2x8x32xf32> to vector<2x1x32xf32>
    %6 = vector.shape_cast %5 : vector<2x1x32xf32> to vector<2x32xf32>
    %c0_3 = arith.constant 0 : index
    %c0_4 = arith.constant 0 : index
    %c0_5 = arith.constant 0 : index
    %7 = vector.load %arg6[%c0_3, %c0_4, %c0_5] : memref<3x32x32xf32, #tpu.memory_space<vmem>>, vector<1x32x32xf32>
    %8 = vector.shape_cast %7 : vector<1x32x32xf32> to vector<32x32xf32>
    %c1 = arith.constant 1 : index
    %c0_6 = arith.constant 0 : index
    %c0_7 = arith.constant 0 : index
    %9 = vector.load %arg6[%c1, %c0_6, %c0_7] : memref<3x32x32xf32, #tpu.memory_space<vmem>>, vector<1x32x32xf32>
    %10 = vector.shape_cast %9 : vector<1x32x32xf32> to vector<32x32xf32>
    %c2 = arith.constant 2 : index
    %c0_8 = arith.constant 0 : index
    %c0_9 = arith.constant 0 : index
    %11 = vector.load %arg6[%c2, %c0_8, %c0_9] : memref<3x32x32xf32, #tpu.memory_space<vmem>>, vector<1x32x32xf32>
    %12 = vector.shape_cast %11 : vector<1x32x32xf32> to vector<32x32xf32>
    %c0_10 = arith.constant 0 : index
    %c0_11 = arith.constant 0 : index
    %13 = vector.load %arg7[%c0_10, %c0_11] : memref<3x32xf32, #tpu.memory_space<vmem>>, vector<1x32xf32>
    %c1_12 = arith.constant 1 : index
    %c0_13 = arith.constant 0 : index
    %14 = vector.load %arg7[%c1_12, %c0_13] : memref<3x32xf32, #tpu.memory_space<vmem>>, vector<1x32xf32>
    %c2_14 = arith.constant 2 : index
    %c0_15 = arith.constant 0 : index
    %15 = vector.load %arg7[%c2_14, %c0_15] : memref<3x32xf32, #tpu.memory_space<vmem>>, vector<1x32xf32>
    %cst_16 = arith.constant dense<0.000000e+00> : vector<2x32xf32>
    %16 = tpu.matmul %6, %8, %cst_16 {dimension_numbers = #tpu.dot_dimension_numbers<[1], [0], [0], [1], [0, 0, 1, 1], [], []>} : vector<2x32xf32>, vector<32x32xf32>, vector<2x32xf32> -> vector<2x32xf32>
    %17 = vector.broadcast %13 : vector<1x32xf32> to vector<2x32xf32>
    %18 = arith.addf %16, %17 : vector<2x32xf32>
    %19 = math.tanh %18 : vector<2x32xf32>
    %cst_17 = arith.constant dense<0.000000e+00> : vector<2x32xf32>
    %20 = tpu.matmul %19, %10, %cst_17 {dimension_numbers = #tpu.dot_dimension_numbers<[1], [0], [0], [1], [0, 0, 1, 1], [], []>} : vector<2x32xf32>, vector<32x32xf32>, vector<2x32xf32> -> vector<2x32xf32>
    %21 = vector.broadcast %14 : vector<1x32xf32> to vector<2x32xf32>
    %22 = arith.addf %20, %21 : vector<2x32xf32>
    %cst_18 = arith.constant 0.000000e+00 : f32
    %23 = vector.broadcast %cst_18 : f32 to vector<2x32xf32>
    %24 = arith.maximumf %22, %23 : vector<2x32xf32>
    %cst_19 = arith.constant dense<0.000000e+00> : vector<2x32xf32>
    %25 = tpu.matmul %24, %12, %cst_19 {dimension_numbers = #tpu.dot_dimension_numbers<[1], [0], [0], [1], [0, 0, 1, 1], [], []>} : vector<2x32xf32>, vector<32x32xf32>, vector<2x32xf32> -> vector<2x32xf32>
    %26 = vector.broadcast %15 : vector<1x32xf32> to vector<2x32xf32>
    %27 = arith.addf %25, %26 : vector<2x32xf32>
    %28 = vector.extract_strided_slice %27 {offsets = [0, 0], sizes = [2, 2], strides = [1, 1]} : vector<2x32xf32> to vector<2x2xf32>
    %c0_20 = arith.constant 0 : index
    %c0_21 = arith.constant 0 : index
    %29 = vector.load %arg8[%c0_20, %c0_21] : memref<2x2xf32, #tpu.memory_space<vmem>>, vector<2x2xf32>
    tpu.vector_store %arg8[%c0_20, %c0_21], %28 {strides = array<i32>} : memref<2x2xf32, #tpu.memory_space<vmem>>, vector<2x2xf32>,
    return
  }
}

</mosaic_0001>

<llo_original>
// kernel: tpu_custom_call.1
$region0: #{tpu_custom_call.1}
  #allocation0 [shape = 'u32[]', space=smem, size = 0x4, offset = 0x4, fixed_abs, tag = 'smem constant byte address 0x4 - core index']
  #allocation1 [shape = 'u32[72,128]{1,0:T(1,128)}', space=vmem, size = 0x9000, scoped, tag = 'internal scratch']
  %s0 = inlined_call_operand.vmem [shape: f32[2,8,32], index: 0, kind: input, shape index: {}]
  %s1 = inlined_call_operand.vmem [shape: f32[9,32,96], index: 1, kind: input, shape index: {}]
  %s2 = inlined_call_operand.vmem [shape: f32[9,32,32], index: 2, kind: input, shape index: {}]
  %s3 = inlined_call_operand.vmem [shape: f32[9,32,128], index: 3, kind: input, shape index: {}]
  %s4 = inlined_call_operand.vmem [shape: f32[9,128,32], index: 4, kind: input, shape index: {}]
  %s5 = inlined_call_operand.vmem [shape: f32[9,8,128], index: 5, kind: input, shape index: {}]
  %s6 = inlined_call_operand.vmem [shape: f32[3,32,32], index: 6, kind: input, shape index: {}]
  %s7 = inlined_call_operand.vmem [shape: f32[3,32], index: 7, kind: input, shape index: {}]
  %s8 = inlined_call_operand.hbm [shape: f32[2,2], index: 8, kind: output, shape index: {}]
  %s9 = sld [smem:[#allocation0]]
  $region49: #{tpu_custom_call.1} parent=0
    _
  %s11 = ssub.s32 1, %s9
  %s12 = scalar_select 0, %s11, %s9
  $region1: #{tpu_custom_call.1} parent=0
    #allocation2 [shape = 'u8[1024]{0}', space=vmem, size = 0x400, scoped, tag = 'output window, operand 0, single buffered']
    #allocation3 [shape = 's32[1]{0}', space=sflag, size = 0x4, scoped, tag = 'scoped memory for tpu_custom_call.1']
    %13 = vsyncpa [#allocation3], 0
    // Predicated region
    $region2: #{tpu_custom_call.1} parent=1 // pred_check
      _
    $region3: #{tpu_custom_call.1} parent=1 // pred_check_branch
      %15 = sbr.rel (0) target = $region5
    $region4: #{tpu_custom_call.1} parent=1 // pred_region
      _
    $region5: #{tpu_custom_call.1} parent=1 // pred_fallthru
      _
    // Predicated region
    $region6: #{tpu_custom_call.1} parent=1 // pred_check
      _
    $region7: #{tpu_custom_call.1} parent=1 // pred_check_branch
      %17 = sbr.rel (0) target = $region9
    $region8: #{tpu_custom_call.1} parent=1 // pred_region
      _
    $region9: #{tpu_custom_call.1} parent=1 // pred_fallthru
      _
    // Predicated region
    $region10: #{tpu_custom_call.1} parent=1 // pred_check
      _
    $region11: #{tpu_custom_call.1} parent=1 // pred_check_branch
      %19 = sbr.rel (0) target = $region13
    $region12: #{tpu_custom_call.1} parent=1 // pred_region
      _
    $region13: #{tpu_custom_call.1} parent=1 // pred_fallthru
      _
    // Predicated region
    $region14: #{tpu_custom_call.1} parent=1 // pred_check
      _
    $region15: #{tpu_custom_call.1} parent=1 // pred_check_branch
      %21 = sbr.rel (0) target = $region17
    $region16: #{tpu_custom_call.1} parent=1 // pred_region
      _
    $region17: #{tpu_custom_call.1} parent=1 // pred_fallthru
      _
    // Predicated region
    $region18: #{tpu_custom_call.1} parent=1 // pred_check
      _
    $region19: #{tpu_custom_call.1} parent=1 // pred_check_branch
      %23 = sbr.rel (0) target = $region21
    $region20: #{tpu_custom_call.1} parent=1 // pred_region
      _
    $region21: #{tpu_custom_call.1} parent=1 // pred_fallthru
      _
    // Predicated region
    $region22: #{tpu_custom_call.1} parent=1 // pred_check
      _
    $region23: #{tpu_custom_call.1} parent=1 // pred_check_branch
      %25 = sbr.rel (0) target = $region25
    $region24: #{tpu_custom_call.1} parent=1 // pred_region
      _
    $region25: #{tpu_custom_call.1} parent=1 // pred_fallthru
      _
    // Predicated region
    $region26: #{tpu_custom_call.1} parent=1 // pred_check
      _
    $region27: #{tpu_custom_call.1} parent=1 // pred_check_branch
      %27 = sbr.rel (0) target = $region29
    $region28: #{tpu_custom_call.1} parent=1 // pred_region
      _
    $region29: #{tpu_custom_call.1} parent=1 // pred_fallthru
      _
    // Predicated region
    $region30: #{tpu_custom_call.1} parent=1 // pred_check
      _
    $region31: #{tpu_custom_call.1} parent=1 // pred_check_branch
      %29 = sbr.rel (0) target = $region33
    $region32: #{tpu_custom_call.1} parent=1 // pred_region
      _
    $region33: #{tpu_custom_call.1} parent=1 // pred_fallthru
      _
    %v30 = vld [vmem:[%s0] sm:$0xff]
    %v31 = vld [vmem:[%s0 + $0x8] sm:$0xff]
    loop: start=0, step=1, limit=9
    $region34: #{tpu_custom_call.1} parent=1 // loop_pre_header
      _
    $region35: #{tpu_custom_call.1} parent=1 // loop_header
      %s33 = sphi 0, %s37
      %p34 = scmp.ge.s32.totalorder %s33, 9
      %v38 = vphi %v30, %v886
      %v39 = vphi %v31, %v887
    $region36: #{tpu_custom_call.1} parent=1 // loop_header_branch
      %36 = sbr.rel (%p34) target = $region40
    $region37: #{tpu_custom_call.1} parent=1 // loop_body
      %s40 = smul.u32 %s33, 32
      %s41 = scalar_lea.vmem %s1, %s40
      %v42 = vld [vmem:[%s41] sm:$0xff]
      %v43 = vld [vmem:[%s41 + $0x8] sm:$0xff]
      %v44 = vld [vmem:[%s41 + $0x10] sm:$0xff]
      %v45 = vld [vmem:[%s41 + $0x18] sm:$0xff]
      %s46 = scalar_lea.vmem %s2, %s40
      %v47 = vld [vmem:[%s46] sm:$0xff]
      %v48 = vld [vmem:[%s46 + $0x8] sm:$0xff]
      %v49 = vld [vmem:[%s46 + $0x10] sm:$0xff]
      %v50 = vld [vmem:[%s46 + $0x18] sm:$0xff]
      %s51 = scalar_lea.vmem %s3, %s40
      %v52 = vld [vmem:[%s51] sm:$0xff]
      %v53 = vld [vmem:[%s51 + $0x8] sm:$0xff]
      %v54 = vld [vmem:[%s51 + $0x10] sm:$0xff]
      %v55 = vld [vmem:[%s51 + $0x18] sm:$0xff]
      %s56 = smul.u32 %s33, 128
      %s57 = scalar_lea.vmem %s4, %s56
      %v58 = vld [vmem:[%s57] sm:$0xff]
      %v59 = vld [vmem:[%s57 + $0x8] sm:$0xff]
      %v60 = vld [vmem:[%s57 + $0x10] sm:$0xff]
      %v61 = vld [vmem:[%s57 + $0x18] sm:$0xff]
      %v62 = vld [vmem:[%s57 + $0x20] sm:$0xff]
      %v63 = vld [vmem:[%s57 + $0x28] sm:$0xff]
      %v64 = vld [vmem:[%s57 + $0x30] sm:$0xff]
      %v65 = vld [vmem:[%s57 + $0x38] sm:$0xff]
      %v66 = vld [vmem:[%s57 + $0x40] sm:$0xff]
      %v67 = vld [vmem:[%s57 + $0x48] sm:$0xff]
      %v68 = vld [vmem:[%s57 + $0x50] sm:$0xff]
      %v69 = vld [vmem:[%s57 + $0x58] sm:$0xff]
      %v70 = vld [vmem:[%s57 + $0x60] sm:$0xff]
      %v71 = vld [vmem:[%s57 + $0x68] sm:$0xff]
      %v72 = vld [vmem:[%s57 + $0x70] sm:$0xff]
      %v73 = vld [vmem:[%s57 + $0x78] sm:$0xff]
      %s74 = smul.u32 %s33, 8
      %s75 = scalar_lea.vmem %s5, %s74
      %v76 = vld [vmem:[%s75] sm:$0xff]
      %v77 = vperm.slane %v76, 0
      %vm78 = vcmask 261120
      %v80 = vsel %vm78, %v38, 0
      %v83 = vsel %vm78, %v39, 0
      %85 = vmatpush.msra.mxu0 0.0
      %86 = vmatpush.msra.mxu0 0.0
      %87 = vmatpush.msra.mxu0 0.0
      %88 = vmatpush.msra.mxu0 0.0
      %89 = vmatpush.msra.mxu0 0.0
      %90 = vmatpush.msra.mxu0 0.0
      %91 = vmatpush.msra.mxu0 0.0
      %92 = vmatpush.msra.mxu0 0.0
      %93 = vmatpush.msra.mxu0 0.0
      %94 = vmatpush.msra.mxu0 0.0
      %95 = vmatpush.msra.mxu0 0.0
      %96 = vmatpush.msra.mxu0 0.0
      %97 = vmatpush.msra.mxu0 %v45
      %98 = vmatpush.msra.mxu0 %v44
      %99 = vmatpush.msra.mxu0 %v43
      %100 = vmatpush.msra.mxu0 %v42
      %101 = vmatmul.f32.gmra.mxu0 %v80
      %v102 = vpop.f32.mrf.mxu0
      %v103 = vadd.f32 %v77, %v102
      %104 = vmatmul.f32.gmra.mxu0 %v83
      %v105 = vpop.f32.mrf.mxu0
      %v106 = vadd.f32 %v77, %v105
      %107 = vdwg.mxu0
      %110 = vrot.lane.b32.xlu0 %v103, 120
      %v111 = vpop.permute.xlu0 %110
      %112 = vrot.lane.b32.xlu0 %v106, 120
      %v113 = vpop.permute.xlu0 %112
      %114 = vrot.lane.b32.xlu0 %v103, 112
      %v115 = vpop.permute.xlu0 %114
      %116 = vrot.lane.b32.xlu0 %v106, 112
      %v117 = vpop.permute.xlu0 %116
      %118 = vrot.lane.b32.xlu0 %v103, 104
      %v119 = vpop.permute.xlu0 %118
      %120 = vrot.lane.b32.xlu0 %v106, 104
      %v121 = vpop.permute.xlu0 %120
      %122 = vrot.lane.b32.xlu0 %v103, 96
      %v123 = vpop.permute.xlu0 %122
      %vm124 = vcmask 64512
      %v125 = vsel %vm124, %v103, 0
      %v127 = vsel %vm124, %v123, 0
      %129 = vmatpush.xpose.msra.mxu0 0.0
      %130 = vmatpush.xpose.msra.mxu0 0.0
      %131 = vmatpush.xpose.msra.mxu0 0.0
      %132 = vmatpush.xpose.msra.mxu0 0.0
      %133 = vmatpush.xpose.msra.mxu0 0.0
      %134 = vmatpush.xpose.msra.mxu0 0.0
      %135 = vmatpush.xpose.msra.mxu0 0.0
      %136 = vmatpush.xpose.msra.mxu0 0.0
      %137 = vmatpush.xpose.msra.mxu0 0.0
      %138 = vmatpush.xpose.msra.mxu0 0.0
      %139 = vmatpush.xpose.msra.mxu0 0.0
      %140 = vmatpush.xpose.msra.mxu0 0.0
      %141 = vmatpush.xpose.msra.mxu0 0.0
      %142 = vmatpush.xpose.msra.mxu0 0.0
      %143 = vmatpush.xpose.msra.mxu0 0.0
      %144 = vmatpush.xpose.msra.mxu0 %v127
      %145 = vmatmul.f32.gmra.mxu0 %v125
      %v146 = vpop.f32.mrf.mxu0
      %v147 = vadd.f32 0.0, %v146
      %148 = vdwg.mxu0
      %149 = vrot.lane.b32.xlu0 %v106, 96
      %v150 = vpop.permute.xlu0 %149
      %v151 = vsel %vm124, %v106, 0
      %v153 = vsel %vm124, %v150, 0
      %155 = vmatpush.xpose.msra.mxu0 0.0
      %156 = vmatpush.xpose.msra.mxu0 0.0
      %157 = vmatpush.xpose.msra.mxu0 0.0
      %158 = vmatpush.xpose.msra.mxu0 0.0
      %159 = vmatpush.xpose.msra.mxu0 0.0
      %160 = vmatpush.xpose.msra.mxu0 0.0
      %161 = vmatpush.xpose.msra.mxu0 0.0
      %162 = vmatpush.xpose.msra.mxu0 0.0
      %163 = vmatpush.xpose.msra.mxu0 0.0
      %164 = vmatpush.xpose.msra.mxu0 0.0
      %165 = vmatpush.xpose.msra.mxu0 0.0
      %166 = vmatpush.xpose.msra.mxu0 0.0
      %167 = vmatpush.xpose.msra.mxu0 0.0
      %168 = vmatpush.xpose.msra.mxu0 0.0
      %169 = vmatpush.xpose.msra.mxu0 0.0
      %170 = vmatpush.xpose.msra.mxu0 %v153
      %171 = vmatmul.f32.gmra.mxu0 %v151
      %v172 = vpop.f32.mrf.mxu0
      %v173 = vadd.f32 0.0, %v172
      %174 = vdwg.mxu0
      %175 = vrot.lane.b32.xlu0 %v111, 96
      %v176 = vpop.permute.xlu0 %175
      %v177 = vsel %vm124, %v111, 0
      %v179 = vsel %vm124, %v176, 0
      %181 = vmatpush.xpose.msra.mxu0 0.0
      %182 = vmatpush.xpose.msra.mxu0 0.0
      %183 = vmatpush.xpose.msra.mxu0 0.0
      %184 = vmatpush.xpose.msra.mxu0 0.0
      %185 = vmatpush.xpose.msra.mxu0 0.0
      %186 = vmatpush.xpose.msra.mxu0 0.0
      %187 = vmatpush.xpose.msra.mxu0 0.0
      %188 = vmatpush.xpose.msra.mxu0 0.0
      %189 = vmatpush.xpose.msra.mxu0 0.0
      %190 = vmatpush.xpose.msra.mxu0 0.0
      %191 = vmatpush.xpose.msra.mxu0 0.0
      %192 = vmatpush.xpose.msra.mxu0 0.0
      %193 = vmatpush.xpose.msra.mxu0 0.0
      %194 = vmatpush.xpose.msra.mxu0 0.0
      %195 = vmatpush.xpose.msra.mxu0 0.0
      %196 = vmatpush.xpose.msra.mxu0 %v179
      %197 = vmatmul.f32.gmra.mxu0 %v177
      %v198 = vpop.f32.mrf.mxu0
      %v199 = vadd.f32 0.0, %v198
      %200 = vdwg.mxu0
      %201 = vrot.lane.b32.xlu0 %v113, 96
      %v202 = vpop.permute.xlu0 %201
      %v203 = vsel %vm124, %v113, 0
      %v205 = vsel %vm124, %v202, 0
      %207 = vmatpush.xpose.msra.mxu0 0.0
      %208 = vmatpush.xpose.msra.mxu0 0.0
      %209 = vmatpush.xpose.msra.mxu0 0.0
      %210 = vmatpush.xpose.msra.mxu0 0.0
      %211 = vmatpush.xpose.msra.mxu0 0.0
      %212 = vmatpush.xpose.msra.mxu0 0.0
      %213 = vmatpush.xpose.msra.mxu0 0.0
      %214 = vmatpush.xpose.msra.mxu0 0.0
      %215 = vmatpush.xpose.msra.mxu0 0.0
      %216 = vmatpush.xpose.msra.mxu0 0.0
      %217 = vmatpush.xpose.msra.mxu0 0.0
      %218 = vmatpush.xpose.msra.mxu0 0.0
      %219 = vmatpush.xpose.msra.mxu0 0.0
      %220 = vmatpush.xpose.msra.mxu0 0.0
      %221 = vmatpush.xpose.msra.mxu0 0.0
      %222 = vmatpush.xpose.msra.mxu0 %v205
      %223 = vmatmul.f32.gmra.mxu0 %v203
      %v224 = vpop.f32.mrf.mxu0
      %v225 = vadd.f32 0.0, %v224
      %226 = vdwg.mxu0
      %227 = vrot.lane.b32.xlu0 %v115, 96
      %v228 = vpop.permute.xlu0 %227
      %v229 = vsel %vm124, %v115, 0
      %v231 = vsel %vm124, %v228, 0
      %233 = vmatpush.xpose.msra.mxu0 0.0
      %234 = vmatpush.xpose.msra.mxu0 0.0
      %235 = vmatpush.xpose.msra.mxu0 0.0
      %236 = vmatpush.xpose.msra.mxu0 0.0
      %237 = vmatpush.xpose.msra.mxu0 0.0
      %238 = vmatpush.xpose.msra.mxu0 0.0
      %239 = vmatpush.xpose.msra.mxu0 0.0
      %240 = vmatpush.xpose.msra.mxu0 0.0
      %241 = vmatpush.xpose.msra.mxu0 0.0
      %242 = vmatpush.xpose.msra.mxu0 0.0
      %243 = vmatpush.xpose.msra.mxu0 0.0
      %244 = vmatpush.xpose.msra.mxu0 0.0
      %245 = vmatpush.xpose.msra.mxu0 0.0
      %246 = vmatpush.xpose.msra.mxu0 0.0
      %247 = vmatpush.xpose.msra.mxu0 0.0
      %248 = vmatpush.xpose.msra.mxu0 %v231
      %249 = vmatmul.f32.gmra.mxu0 %v229
      %v250 = vpop.f32.mrf.mxu0
      %v251 = vadd.f32 0.0, %v250
      %252 = vdwg.mxu0
      %253 = vrot.lane.b32.xlu0 %v117, 96
      %v254 = vpop.permute.xlu0 %253
      %v255 = vsel %vm124, %v117, 0
      %v257 = vsel %vm124, %v254, 0
      %259 = vmatpush.xpose.msra.mxu0 0.0
      %260 = vmatpush.xpose.msra.mxu0 0.0
      %261 = vmatpush.xpose.msra.mxu0 0.0
      %262 = vmatpush.xpose.msra.mxu0 0.0
      %263 = vmatpush.xpose.msra.mxu0 0.0
      %264 = vmatpush.xpose.msra.mxu0 0.0
      %265 = vmatpush.xpose.msra.mxu0 0.0
      %266 = vmatpush.xpose.msra.mxu0 0.0
      %267 = vmatpush.xpose.msra.mxu0 0.0
      %268 = vmatpush.xpose.msra.mxu0 0.0
      %269 = vmatpush.xpose.msra.mxu0 0.0
      %270 = vmatpush.xpose.msra.mxu0 0.0
      %271 = vmatpush.xpose.msra.mxu0 0.0
      %272 = vmatpush.xpose.msra.mxu0 0.0
      %273 = vmatpush.xpose.msra.mxu0 0.0
      %274 = vmatpush.xpose.msra.mxu0 %v257
      %275 = vmatmul.f32.gmra.mxu0 %v255
      %v276 = vpop.f32.mrf.mxu0
      %v277 = vadd.f32 0.0, %v276
      %278 = vdwg.mxu0
      %279 = vrot.lane.b32.xlu0 %v119, 96
      %v280 = vpop.permute.xlu0 %279
      %v281 = vsel %vm124, %v119, 0
      %v283 = vsel %vm124, %v280, 0
      %285 = vmatpush.xpose.msra.mxu0 0.0
      %286 = vmatpush.xpose.msra.mxu0 0.0
      %287 = vmatpush.xpose.msra.mxu0 0.0
      %288 = vmatpush.xpose.msra.mxu0 0.0
      %289 = vmatpush.xpose.msra.mxu0 0.0
      %290 = vmatpush.xpose.msra.mxu0 0.0
      %291 = vmatpush.xpose.msra.mxu0 0.0
      %292 = vmatpush.xpose.msra.mxu0 0.0
      %293 = vmatpush.xpose.msra.mxu0 0.0
      %294 = vmatpush.xpose.msra.mxu0 0.0
      %295 = vmatpush.xpose.msra.mxu0 0.0
      %296 = vmatpush.xpose.msra.mxu0 0.0
      %297 = vmatpush.xpose.msra.mxu0 0.0
      %298 = vmatpush.xpose.msra.mxu0 0.0
      %299 = vmatpush.xpose.msra.mxu0 0.0
      %300 = vmatpush.xpose.msra.mxu0 %v283
      %301 = vmatmul.f32.gmra.mxu0 %v281
      %v302 = vpop.f32.mrf.mxu0
      %v303 = vadd.f32 0.0, %v302
      %304 = vdwg.mxu0
      %305 = vrot.lane.b32.xlu0 %v121, 96
      %v306 = vpop.permute.xlu0 %305
      %v307 = vsel %vm124, %v121, 0
      %v309 = vsel %vm124, %v306, 0
      %311 = vmatpush.xpose.msra.mxu0 0.0
      %312 = vmatpush.xpose.msra.mxu0 0.0
      %313 = vmatpush.xpose.msra.mxu0 0.0
      %314 = vmatpush.xpose.msra.mxu0 0.0
      %315 = vmatpush.xpose.msra.mxu0 0.0
      %316 = vmatpush.xpose.msra.mxu0 0.0
      %317 = vmatpush.xpose.msra.mxu0 0.0
      %318 = vmatpush.xpose.msra.mxu0 0.0
      %319 = vmatpush.xpose.msra.mxu0 0.0
      %320 = vmatpush.xpose.msra.mxu0 0.0
      %321 = vmatpush.xpose.msra.mxu0 0.0
      %322 = vmatpush.xpose.msra.mxu0 0.0
      %323 = vmatpush.xpose.msra.mxu0 0.0
      %324 = vmatpush.xpose.msra.mxu0 0.0
      %325 = vmatpush.xpose.msra.mxu0 0.0
      %326 = vmatpush.xpose.msra.mxu0 %v309
      %327 = vmatmul.f32.gmra.mxu0 %v307
      %v328 = vpop.f32.mrf.mxu0
      %v329 = vadd.f32 0.0, %v328
      %330 = vdwg.mxu0
      %v331 = vmul.f32 %v147, 0.35355338
      %v332 = vmul.f32 %v173, 0.35355338
      %v333 = vmul.f32 %v199, 0.35355338
      %v334 = vmul.f32 %v225, 0.35355338
      %v335 = vmul.f32 %v251, 0.35355338
      %v336 = vmul.f32 %v277, 0.35355338
      %v337 = vmul.f32 %v303, 0.35355338
      %v338 = vmul.f32 %v329, 0.35355338
      %v339 = vsel %vm124, %v331, -inf
      %340 = vmax.xlane.f32.xlu0 %v339
      %v341 = vpop.xlane.xlu0 %340
      %v342 = vsel %vm124, %v332, -inf
      %343 = vmax.xlane.f32.xlu0 %v342
      %v344 = vpop.xlane.xlu0 %343
      %v345 = vsel %vm124, %v333, -inf
      %346 = vmax.xlane.f32.xlu0 %v345
      %v347 = vpop.xlane.xlu0 %346
      %v348 = vsel %vm124, %v334, -inf
      %349 = vmax.xlane.f32.xlu0 %v348
      %v350 = vpop.xlane.xlu0 %349
      %v351 = vsel %vm124, %v335, -inf
      %352 = vmax.xlane.f32.xlu0 %v351
      %v353 = vpop.xlane.xlu0 %352
      %v354 = vsel %vm124, %v336, -inf
      %355 = vmax.xlane.f32.xlu0 %v354
      %v356 = vpop.xlane.xlu0 %355
      %v357 = vsel %vm124, %v337, -inf
      %358 = vmax.xlane.f32.xlu0 %v357
      %v359 = vpop.xlane.xlu0 %358
      %v360 = vsel %vm124, %v338, -inf
      %361 = vmax.xlane.f32.xlu0 %v360
      %v362 = vpop.xlane.xlu0 %361
      %v363 = vsub.f32 %v331, %v341
      %v364 = vsub.f32 %v332, %v344
      %v365 = vsub.f32 %v333, %v347
      %v366 = vsub.f32 %v334, %v350
      %v367 = vsub.f32 %v335, %v353
      %v368 = vsub.f32 %v336, %v356
      %v369 = vsub.f32 %v337, %v359
      %v370 = vsub.f32 %v338, %v362
      %v371 = vmul.f32 %v363, 1.442695
      %v372 = vpow.pop %v371
      %v373 = vmul.f32 %v364, 1.442695
      %v374 = vpow.pop %v373
      %v375 = vmul.f32 %v365, 1.442695
      %v376 = vpow.pop %v375
      %v377 = vmul.f32 %v366, 1.442695
      %v378 = vpow.pop %v377
      %v379 = vmul.f32 %v367, 1.442695
      %v380 = vpow.pop %v379
      %v381 = vmul.f32 %v368, 1.442695
      %v382 = vpow.pop %v381
      %v383 = vmul.f32 %v369, 1.442695
      %v384 = vpow.pop %v383
      %v385 = vmul.f32 %v370, 1.442695
      %v386 = vpow.pop %v385
      %v387 = vsel %vm124, %v372, 0.0
      %388 = vadd.xlane.f32.xlu0 %v387
      %v389 = vpop.xlane.xlu0 %388
      %v390 = vsel %vm124, %v374, 0.0
      %391 = vadd.xlane.f32.xlu0 %v390
      %v392 = vpop.xlane.xlu0 %391
      %v393 = vsel %vm124, %v376, 0.0
      %394 = vadd.xlane.f32.xlu0 %v393
      %v395 = vpop.xlane.xlu0 %394
      %v396 = vsel %vm124, %v378, 0.0
      %397 = vadd.xlane.f32.xlu0 %v396
      %v398 = vpop.xlane.xlu0 %397
      %v399 = vsel %vm124, %v380, 0.0
      %400 = vadd.xlane.f32.xlu0 %v399
      %v401 = vpop.xlane.xlu0 %400
      %v402 = vsel %vm124, %v382, 0.0
      %403 = vadd.xlane.f32.xlu0 %v402
      %v404 = vpop.xlane.xlu0 %403
      %v405 = vsel %vm124, %v384, 0.0
      %406 = vadd.xlane.f32.xlu0 %v405
      %v407 = vpop.xlane.xlu0 %406
      %v408 = vsel %vm124, %v386, 0.0
      %409 = vadd.xlane.f32.xlu0 %v408
      %v410 = vpop.xlane.xlu0 %409
      %v411 = vrcp.pop %v389
      %v412 = vrcp.pop %v392
      %v413 = vrcp.pop %v395
      %v414 = vrcp.pop %v398
      %v415 = vrcp.pop %v401
      %v416 = vrcp.pop %v404
      %v417 = vrcp.pop %v407
      %v418 = vrcp.pop %v410
      %v419 = vmul.f32 %v372, %v411
      %v420 = vmul.f32 %v374, %v412
      %v421 = vmul.f32 %v376, %v413
      %v422 = vmul.f32 %v378, %v414
      %v423 = vmul.f32 %v380, %v415
      %v424 = vmul.f32 %v382, %v416
      %v425 = vmul.f32 %v384, %v417
      %v426 = vmul.f32 %v386, %v418
      %427 = vrot.lane.b32.xlu0 %v103, 64
      %v428 = vpop.permute.xlu0 %427
      %v431 = vsel %vm124, %v419, 0
      %433 = vmatpush.msra.mxu0 0.0
      %434 = vmatpush.msra.mxu0 0.0
      %435 = vmatpush.msra.mxu0 0.0
      %436 = vmatpush.msra.mxu0 0.0
      %437 = vmatpush.msra.mxu0 0.0
      %438 = vmatpush.msra.mxu0 0.0
      %439 = vmatpush.msra.mxu0 0.0
      %440 = vmatpush.msra.mxu0 0.0
      %441 = vmatpush.msra.mxu0 0.0
      %442 = vmatpush.msra.mxu0 0.0
      %443 = vmatpush.msra.mxu0 0.0
      %444 = vmatpush.msra.mxu0 0.0
      %445 = vmatpush.msra.mxu0 0.0
      %446 = vmatpush.msra.mxu0 0.0
      %447 = vmatpush.msra.mxu0 0.0
      %448 = vmatpush.msra.mxu0 %v428
      %449 = vmatmul.f32.gmra.mxu0 %v431
      %v450 = vpop.f32.mrf.mxu0
      %v451 = vadd.f32 0.0, %v450
      %452 = vdwg.mxu0
      %453 = vrot.lane.b32.xlu0 %v106, 64
      %v454 = vpop.permute.xlu0 %453
      %v457 = vsel %vm124, %v420, 0
      %459 = vmatpush.msra.mxu0 0.0
      %460 = vmatpush.msra.mxu0 0.0
      %461 = vmatpush.msra.mxu0 0.0
      %462 = vmatpush.msra.mxu0 0.0
      %463 = vmatpush.msra.mxu0 0.0
      %464 = vmatpush.msra.mxu0 0.0
      %465 = vmatpush.msra.mxu0 0.0
      %466 = vmatpush.msra.mxu0 0.0
      %467 = vmatpush.msra.mxu0 0.0
      %468 = vmatpush.msra.mxu0 0.0
      %469 = vmatpush.msra.mxu0 0.0
      %470 = vmatpush.msra.mxu0 0.0
      %471 = vmatpush.msra.mxu0 0.0
      %472 = vmatpush.msra.mxu0 0.0
      %473 = vmatpush.msra.mxu0 0.0
      %474 = vmatpush.msra.mxu0 %v454
      %475 = vmatmul.f32.gmra.mxu0 %v457
      %v476 = vpop.f32.mrf.mxu0
      %v477 = vadd.f32 0.0, %v476
      %478 = vdwg.mxu0
      %479 = vrot.lane.b32.xlu0 %v111, 64
      %v480 = vpop.permute.xlu0 %479
      %v483 = vsel %vm124, %v421, 0
      %485 = vmatpush.msra.mxu0 0.0
      %486 = vmatpush.msra.mxu0 0.0
      %487 = vmatpush.msra.mxu0 0.0
      %488 = vmatpush.msra.mxu0 0.0
      %489 = vmatpush.msra.mxu0 0.0
      %490 = vmatpush.msra.mxu0 0.0
      %491 = vmatpush.msra.mxu0 0.0
      %492 = vmatpush.msra.mxu0 0.0
      %493 = vmatpush.msra.mxu0 0.0
      %494 = vmatpush.msra.mxu0 0.0
      %495 = vmatpush.msra.mxu0 0.0
      %496 = vmatpush.msra.mxu0 0.0
      %497 = vmatpush.msra.mxu0 0.0
      %498 = vmatpush.msra.mxu0 0.0
      %499 = vmatpush.msra.mxu0 0.0
      %500 = vmatpush.msra.mxu0 %v480
      %501 = vmatmul.f32.gmra.mxu0 %v483
      %v502 = vpop.f32.mrf.mxu0
      %v503 = vadd.f32 0.0, %v502
      %504 = vdwg.mxu0
      %505 = vrot.lane.b32.xlu0 %v113, 64
      %v506 = vpop.permute.xlu0 %505
      %v509 = vsel %vm124, %v422, 0
      %511 = vmatpush.msra.mxu0 0.0
      %512 = vmatpush.msra.mxu0 0.0
      %513 = vmatpush.msra.mxu0 0.0
      %514 = vmatpush.msra.mxu0 0.0
      %515 = vmatpush.msra.mxu0 0.0
      %516 = vmatpush.msra.mxu0 0.0
      %517 = vmatpush.msra.mxu0 0.0
      %518 = vmatpush.msra.mxu0 0.0
      %519 = vmatpush.msra.mxu0 0.0
      %520 = vmatpush.msra.mxu0 0.0
      %521 = vmatpush.msra.mxu0 0.0
      %522 = vmatpush.msra.mxu0 0.0
      %523 = vmatpush.msra.mxu0 0.0
      %524 = vmatpush.msra.mxu0 0.0
      %525 = vmatpush.msra.mxu0 0.0
      %526 = vmatpush.msra.mxu0 %v506
      %527 = vmatmul.f32.gmra.mxu0 %v509
      %v528 = vpop.f32.mrf.mxu0
      %v529 = vadd.f32 0.0, %v528
      %530 = vdwg.mxu0
      %531 = vrot.lane.b32.xlu0 %v115, 64
      %v532 = vpop.permute.xlu0 %531
      %v535 = vsel %vm124, %v423, 0
      %537 = vmatpush.msra.mxu0 0.0
      %538 = vmatpush.msra.mxu0 0.0
      %539 = vmatpush.msra.mxu0 0.0
      %540 = vmatpush.msra.mxu0 0.0
      %541 = vmatpush.msra.mxu0 0.0
      %542 = vmatpush.msra.mxu0 0.0
      %543 = vmatpush.msra.mxu0 0.0
      %544 = vmatpush.msra.mxu0 0.0
      %545 = vmatpush.msra.mxu0 0.0
      %546 = vmatpush.msra.mxu0 0.0
      %547 = vmatpush.msra.mxu0 0.0
      %548 = vmatpush.msra.mxu0 0.0
      %549 = vmatpush.msra.mxu0 0.0
      %550 = vmatpush.msra.mxu0 0.0
      %551 = vmatpush.msra.mxu0 0.0
      %552 = vmatpush.msra.mxu0 %v532
      %553 = vmatmul.f32.gmra.mxu0 %v535
      %v554 = vpop.f32.mrf.mxu0
      %v555 = vadd.f32 0.0, %v554
      %556 = vdwg.mxu0
      %557 = vrot.lane.b32.xlu0 %v117, 64
      %v558 = vpop.permute.xlu0 %557
      %v561 = vsel %vm124, %v424, 0
      %563 = vmatpush.msra.mxu0 0.0
      %564 = vmatpush.msra.mxu0 0.0
      %565 = vmatpush.msra.mxu0 0.0
      %566 = vmatpush.msra.mxu0 0.0
      %567 = vmatpush.msra.mxu0 0.0
      %568 = vmatpush.msra.mxu0 0.0
      %569 = vmatpush.msra.mxu0 0.0
      %570 = vmatpush.msra.mxu0 0.0
      %571 = vmatpush.msra.mxu0 0.0
      %572 = vmatpush.msra.mxu0 0.0
      %573 = vmatpush.msra.mxu0 0.0
      %574 = vmatpush.msra.mxu0 0.0
      %575 = vmatpush.msra.mxu0 0.0
      %576 = vmatpush.msra.mxu0 0.0
      %577 = vmatpush.msra.mxu0 0.0
      %578 = vmatpush.msra.mxu0 %v558
      %579 = vmatmul.f32.gmra.mxu0 %v561
      %v580 = vpop.f32.mrf.mxu0
      %v581 = vadd.f32 0.0, %v580
      %582 = vdwg.mxu0
      %583 = vrot.lane.b32.xlu0 %v119, 64
      %v584 = vpop.permute.xlu0 %583
      %v587 = vsel %vm124, %v425, 0
      %589 = vmatpush.msra.mxu0 0.0
      %590 = vmatpush.msra.mxu0 0.0
      %591 = vmatpush.msra.mxu0 0.0
      %592 = vmatpush.msra.mxu0 0.0
      %593 = vmatpush.msra.mxu0 0.0
      %594 = vmatpush.msra.mxu0 0.0
      %595 = vmatpush.msra.mxu0 0.0
      %596 = vmatpush.msra.mxu0 0.0
      %597 = vmatpush.msra.mxu0 0.0
      %598 = vmatpush.msra.mxu0 0.0
      %599 = vmatpush.msra.mxu0 0.0
      %600 = vmatpush.msra.mxu0 0.0
      %601 = vmatpush.msra.mxu0 0.0
      %602 = vmatpush.msra.mxu0 0.0
      %603 = vmatpush.msra.mxu0 0.0
      %604 = vmatpush.msra.mxu0 %v584
      %605 = vmatmul.f32.gmra.mxu0 %v587
      %v606 = vpop.f32.mrf.mxu0
      %v607 = vadd.f32 0.0, %v606
      %608 = vdwg.mxu0
      %609 = vrot.lane.b32.xlu0 %v121, 64
      %v610 = vpop.permute.xlu0 %609
      %v613 = vsel %vm124, %v426, 0
      %615 = vmatpush.msra.mxu0 0.0
      %616 = vmatpush.msra.mxu0 0.0
      %617 = vmatpush.msra.mxu0 0.0
      %618 = vmatpush.msra.mxu0 0.0
      %619 = vmatpush.msra.mxu0 0.0
      %620 = vmatpush.msra.mxu0 0.0
      %621 = vmatpush.msra.mxu0 0.0
      %622 = vmatpush.msra.mxu0 0.0
      %623 = vmatpush.msra.mxu0 0.0
      %624 = vmatpush.msra.mxu0 0.0
      %625 = vmatpush.msra.mxu0 0.0
      %626 = vmatpush.msra.mxu0 0.0
      %627 = vmatpush.msra.mxu0 0.0
      %628 = vmatpush.msra.mxu0 0.0
      %629 = vmatpush.msra.mxu0 0.0
      %630 = vmatpush.msra.mxu0 %v610
      %631 = vmatmul.f32.gmra.mxu0 %v613
      %v632 = vpop.f32.mrf.mxu0
      %v633 = vadd.f32 0.0, %v632
      %634 = vdwg.mxu0
      %637 = vrot.lane.b32.xlu0 %v503, 8
      %v638 = vpop.permute.xlu0 %637
      %639 = vrot.lane.b32.xlu0 %v529, 8
      %v640 = vpop.permute.xlu0 %639
      %645 = vrot.lane.b32.xlu0 %v555, 16
      %v646 = vpop.permute.xlu0 %645
      %647 = vrot.lane.b32.xlu0 %v581, 16
      %v648 = vpop.permute.xlu0 %647
      %653 = vrot.lane.b32.xlu0 %v607, 24
      %v654 = vpop.permute.xlu0 %653
      %655 = vrot.lane.b32.xlu0 %v633, 24
      %v656 = vpop.permute.xlu0 %655
      %v659 = vsel %vm124, %v451, %v638
      %v660 = vsel %vm124, %v477, %v640
      %vm661 = vcmask 130048
      %v662 = vsel %vm661, %v659, %v646
      %v663 = vsel %vm661, %v660, %v648
      %vm664 = vcmask 195584
      %v665 = vsel %vm664, %v662, %v654
      %v666 = vsel %vm664, %v663, %v656
      %v667 = vperm.slane %v76, 1
      %v669 = vsel %vm78, %v665, 0
      %v672 = vsel %vm78, %v666, 0
      %674 = vmatpush.msra.mxu0 0.0
      %675 = vmatpush.msra.mxu0 0.0
      %676 = vmatpush.msra.mxu0 0.0
      %677 = vmatpush.msra.mxu0 0.0
      %678 = vmatpush.msra.mxu0 0.0
      %679 = vmatpush.msra.mxu0 0.0
      %680 = vmatpush.msra.mxu0 0.0
      %681 = vmatpush.msra.mxu0 0.0
      %682 = vmatpush.msra.mxu0 0.0
      %683 = vmatpush.msra.mxu0 0.0
      %684 = vmatpush.msra.mxu0 0.0
      %685 = vmatpush.msra.mxu0 0.0
      %686 = vmatpush.msra.mxu0 %v50
      %687 = vmatpush.msra.mxu0 %v49
      %688 = vmatpush.msra.mxu0 %v48
      %689 = vmatpush.msra.mxu0 %v47
      %690 = vmatmul.f32.gmra.mxu0 %v669
      %v691 = vpop.f32.mrf.mxu0
      %v692 = vadd.f32 %v667, %v691
      %693 = vmatmul.f32.gmra.mxu0 %v672
      %v694 = vpop.f32.mrf.mxu0
      %v695 = vadd.f32 %v667, %v694
      %696 = vdwg.mxu0
      %v697 = vadd.f32 %v692, %v38
      %v698 = vadd.f32 %v695, %v39
      %v699 = vsel %vm78, %v697, 0.0
      %700 = vadd.xlane.f32.xlu0 %v699
      %v701 = vpop.xlane.xlu0 %700
      %v702 = vsel %vm78, %v698, 0.0
      %703 = vadd.xlane.f32.xlu0 %v702
      %v704 = vpop.xlane.xlu0 %703
      %v705 = vrcp.pop 32.0
      %v706 = vmul.f32 32.0, %v705
      %v707 = vsub.f32 1.0, %v706
      %v708 = vmul.f32 %v705, %v707
      %v709 = vadd.f32 %v705, %v708
      %vm710 = vweird.f32 %v705
      %v711 = vsel %vm710, %v705, %v709
      %v712 = vmul.f32 %v701, %v711
      %v713 = vmul.f32 %v704, %v711
      %v714 = vmul.f32 %v697, %v697
      %v715 = vmul.f32 %v698, %v698
      %v716 = vsel %vm78, %v714, 0.0
      %717 = vadd.xlane.f32.xlu0 %v716
      %v718 = vpop.xlane.xlu0 %717
      %v719 = vsel %vm78, %v715, 0.0
      %720 = vadd.xlane.f32.xlu0 %v719
      %v721 = vpop.xlane.xlu0 %720
      %v722 = vmul.f32 %v718, %v711
      %v723 = vmul.f32 %v721, %v711
      %v724 = vmul.f32 %v712, %v712
      %v725 = vmul.f32 %v713, %v713
      %v726 = vsub.f32 %v722, %v724
      %v727 = vsub.f32 %v723, %v725
      %v728 = vsub.f32 %v697, %v712
      %v729 = vsub.f32 %v698, %v713
      %v730 = vadd.f32 %v726, 1e-12
      %v731 = vadd.f32 %v727, 1e-12
      %v732 = vrsqrt.pop %v730
      %v733 = vmul.f32 %v732, %v730
      %v734 = vmul.f32 %v733, %v732
      %v735 = vmul.f32 0.5, %v734
      %v736 = vsub.f32 1.5, %v735
      %v737 = vmul.f32 %v732, %v736
      %vm738 = vweird.f32 %v730
      %vm739 = vweird.f32 %v732
      %vm740 = vmor %vm738, %vm739
      %v741 = vsel %vm740, %v732, %v737
      %v742 = vrsqrt.pop %v731
      %v743 = vmul.f32 %v742, %v731
      %v744 = vmul.f32 %v743, %v742
      %v745 = vmul.f32 0.5, %v744
      %v746 = vsub.f32 1.5, %v745
      %v747 = vmul.f32 %v742, %v746
      %vm748 = vweird.f32 %v731
      %vm749 = vweird.f32 %v742
      %vm750 = vmor %vm748, %vm749
      %v751 = vsel %vm750, %v742, %v747
      %v752 = vmul.f32 %v728, %v741
      %v753 = vmul.f32 %v729, %v751
      %v754 = vperm.slane %v76, 2
      %v755 = vmul.f32 %v752, %v754
      %v756 = vmul.f32 %v753, %v754
      %v757 = vperm.slane %v76, 3
      %v758 = vadd.f32 %v755, %v757
      %v759 = vadd.f32 %v756, %v757
      %v760 = vperm.slane %v76, 4
      %v762 = vsel %vm78, %v758, 0
      %v765 = vsel %vm78, %v759, 0
      %767 = vmatpush.msra.mxu0 0.0
      %768 = vmatpush.msra.mxu0 0.0
      %769 = vmatpush.msra.mxu0 0.0
      %770 = vmatpush.msra.mxu0 0.0
      %771 = vmatpush.msra.mxu0 0.0
      %772 = vmatpush.msra.mxu0 0.0
      %773 = vmatpush.msra.mxu0 0.0
      %774 = vmatpush.msra.mxu0 0.0
      %775 = vmatpush.msra.mxu0 0.0
      %776 = vmatpush.msra.mxu0 0.0
      %777 = vmatpush.msra.mxu0 0.0
      %778 = vmatpush.msra.mxu0 0.0
      %779 = vmatpush.msra.mxu0 %v55
      %780 = vmatpush.msra.mxu0 %v54
      %781 = vmatpush.msra.mxu0 %v53
      %782 = vmatpush.msra.mxu0 %v52
      %783 = vmatmul.f32.gmra.mxu0 %v762
      %v784 = vpop.f32.mrf.mxu0
      %v785 = vadd.f32 %v760, %v784
      %786 = vmatmul.f32.gmra.mxu0 %v765
      %v787 = vpop.f32.mrf.mxu0
      %v788 = vadd.f32 %v760, %v787
      %789 = vdwg.mxu0
      %v790 = vmul.f32 %v785, 0.5
      %v791 = vmul.f32 %v788, 0.5
      %v792 = vmul.f32 %v785, 0.044715
      %v793 = vmul.f32 %v788, 0.044715
      %v794 = vmul.f32 %v792, %v785
      %v795 = vmul.f32 %v793, %v788
      %v796 = vmul.f32 %v794, %v785
      %v797 = vmul.f32 %v795, %v788
      %v798 = vadd.f32 %v785, %v796
      %v799 = vadd.f32 %v788, %v797
      %v800 = vmul.f32 %v798, 0.7978846
      %v801 = vmul.f32 %v799, 0.7978846
      %v802 = vtanh.pop %v800
      %v803 = vtanh.pop %v801
      %v804 = vadd.f32 %v802, 1.0
      %v805 = vadd.f32 %v803, 1.0
      %v806 = vmul.f32 %v790, %v804
      %v807 = vmul.f32 %v791, %v805
      %v808 = vperm.slane %v76, 5
      %809 = vmatpush.msra.mxu0 %v73
      %810 = vmatpush.msra.mxu0 %v72
      %811 = vmatpush.msra.mxu0 %v71
      %812 = vmatpush.msra.mxu0 %v70
      %813 = vmatpush.msra.mxu0 %v69
      %814 = vmatpush.msra.mxu0 %v68
      %815 = vmatpush.msra.mxu0 %v67
      %816 = vmatpush.msra.mxu0 %v66
      %817 = vmatpush.msra.mxu0 %v65
      %818 = vmatpush.msra.mxu0 %v64
      %819 = vmatpush.msra.mxu0 %v63
      %820 = vmatpush.msra.mxu0 %v62
      %821 = vmatpush.msra.mxu0 %v61
      %822 = vmatpush.msra.mxu0 %v60
      %823 = vmatpush.msra.mxu0 %v59
      %824 = vmatpush.msra.mxu0 %v58
      %825 = vmatmul.f32.gmra.mxu0 %v806
      %v826 = vpop.f32.mrf.mxu0
      %v827 = vadd.f32 %v808, %v826
      %828 = vmatmul.f32.gmra.mxu0 %v807
      %v829 = vpop.f32.mrf.mxu0
      %v830 = vadd.f32 %v808, %v829
      %831 = vdwg.mxu0
      %v832 = vadd.f32 %v827, %v758
      %v833 = vadd.f32 %v830, %v759
      %v834 = vsel %vm78, %v832, 0.0
      %835 = vadd.xlane.f32.xlu0 %v834
      %v836 = vpop.xlane.xlu0 %835
      %v837 = vsel %vm78, %v833, 0.0
      %838 = vadd.xlane.f32.xlu0 %v837
      %v839 = vpop.xlane.xlu0 %838
      %v840 = vmul.f32 %v836, %v711
      %v841 = vmul.f32 %v839, %v711
      %v842 = vmul.f32 %v832, %v832
      %v843 = vmul.f32 %v833, %v833
      %v844 = vsel %vm78, %v842, 0.0
      %845 = vadd.xlane.f32.xlu0 %v844
      %v846 = vpop.xlane.xlu0 %845
      %v847 = vsel %vm78, %v843, 0.0
      %848 = vadd.xlane.f32.xlu0 %v847
      %v849 = vpop.xlane.xlu0 %848
      %v850 = vmul.f32 %v846, %v711
      %v851 = vmul.f32 %v849, %v711
      %v852 = vmul.f32 %v840, %v840
      %v853 = vmul.f32 %v841, %v841
      %v854 = vsub.f32 %v850, %v852
      %v855 = vsub.f32 %v851, %v853
      %v856 = vsub.f32 %v832, %v840
      %v857 = vsub.f32 %v833, %v841
      %v858 = vadd.f32 %v854, 1e-12
      %v859 = vadd.f32 %v855, 1e-12
      %v860 = vrsqrt.pop %v858
      %v861 = vmul.f32 %v860, %v858
      %v862 = vmul.f32 %v861, %v860
      %v863 = vmul.f32 0.5, %v862
      %v864 = vsub.f32 1.5, %v863
      %v865 = vmul.f32 %v860, %v864
      %vm866 = vweird.f32 %v858
      %vm867 = vweird.f32 %v860
      %vm868 = vmor %vm866, %vm867
      %v869 = vsel %vm868, %v860, %v865
      %v870 = vrsqrt.pop %v859
      %v871 = vmul.f32 %v870, %v859
      %v872 = vmul.f32 %v871, %v870
      %v873 = vmul.f32 0.5, %v872
      %v874 = vsub.f32 1.5, %v873
      %v875 = vmul.f32 %v870, %v874
      %vm876 = vweird.f32 %v859
      %vm877 = vweird.f32 %v870
      %vm878 = vmor %vm876, %vm877
      %v879 = vsel %vm878, %v870, %v875
      %v880 = vmul.f32 %v856, %v869
      %v881 = vmul.f32 %v857, %v879
      %v882 = vperm.slane %v76, 6
      %v883 = vmul.f32 %v880, %v882
      %v884 = vmul.f32 %v881, %v882
      %v885 = vperm.slane %v76, 7
      %v886 = vadd.f32 %v883, %v885
      %v887 = vadd.f32 %v884, %v885
    $region38: #{tpu_custom_call.1} parent=1 // loop_footer
      %s37 = sadd.s32 1, %s33
    $region39: #{tpu_custom_call.1} parent=1 // loop_footer_branch
      %32 = sbr.rel target = $region35
    $region40: #{tpu_custom_call.1} parent=1 // loop_exit
      _
    %v888 = vld [vmem:[%s6] sm:$0xff]
    %v889 = vld [vmem:[%s6 + $0x8] sm:$0xff]
    %v890 = vld [vmem:[%s6 + $0x10] sm:$0xff]
    %v891 = vld [vmem:[%s6 + $0x18] sm:$0xff]
    %s892 = scalar_lea.vmem %s6, 32
    %v893 = vld [vmem:[%s892] sm:$0xff]
    %v894 = vld [vmem:[%s892 + $0x8] sm:$0xff]
    %v895 = vld [vmem:[%s892 + $0x10] sm:$0xff]
    %v896 = vld [vmem:[%s892 + $0x18] sm:$0xff]
    %s897 = scalar_lea.vmem %s6, 64
    %v898 = vld [vmem:[%s897] sm:$0xff]
    %v899 = vld [vmem:[%s897 + $0x8] sm:$0xff]
    %v900 = vld [vmem:[%s897 + $0x10] sm:$0xff]
    %v901 = vld [vmem:[%s897 + $0x18] sm:$0xff]
    %v902 = vld [vmem:[%s7] sm:$0x1]
    %v903 = vld [vmem:[%s7 + $0x1] sm:$0x1]
    %v904 = vld [vmem:[%s7 + $0x2] sm:$0x1]
    %v905 = vperm.slane %v902, 0
    %v908 = vrot.slane %v39, 7
    %vm909 = vcmask 1041409
    %v910 = vsel %vm909, %v908, %v38
    %vm911 = vcmask 261120
    %v912 = vsel %vm911, %v910, 0
    %914 = vmatpush.msra.mxu0 0.0
    %915 = vmatpush.msra.mxu0 0.0
    %916 = vmatpush.msra.mxu0 0.0
    %917 = vmatpush.msra.mxu0 0.0
    %918 = vmatpush.msra.mxu0 0.0
    %919 = vmatpush.msra.mxu0 0.0
    %920 = vmatpush.msra.mxu0 0.0
    %921 = vmatpush.msra.mxu0 0.0
    %922 = vmatpush.msra.mxu0 0.0
    %923 = vmatpush.msra.mxu0 0.0
    %924 = vmatpush.msra.mxu0 0.0
    %925 = vmatpush.msra.mxu0 0.0
    %926 = vmatpush.msra.mxu0 %v891
    %927 = vmatpush.msra.mxu0 %v890
    %928 = vmatpush.msra.mxu0 %v889
    %929 = vmatpush.msra.mxu0 %v888
    %930 = vmatmul.f32.gmra.mxu0 %v912
    %v931 = vpop.f32.mrf.mxu0
    %v932 = vadd.f32 %v905, %v931
    %933 = vdwg.mxu0
    %v934 = vtanh.pop %v932
    %v935 = vperm.slane %v903, 0
    %v937 = vsel %vm911, %v934, 0
    %939 = vmatpush.msra.mxu0 0.0
    %940 = vmatpush.msra.mxu0 0.0
    %941 = vmatpush.msra.mxu0 0.0
    %942 = vmatpush.msra.mxu0 0.0
    %943 = vmatpush.msra.mxu0 0.0
    %944 = vmatpush.msra.mxu0 0.0
    %945 = vmatpush.msra.mxu0 0.0
    %946 = vmatpush.msra.mxu0 0.0
    %947 = vmatpush.msra.mxu0 0.0
    %948 = vmatpush.msra.mxu0 0.0
    %949 = vmatpush.msra.mxu0 0.0
    %950 = vmatpush.msra.mxu0 0.0
    %951 = vmatpush.msra.mxu0 %v896
    %952 = vmatpush.msra.mxu0 %v895
    %953 = vmatpush.msra.mxu0 %v894
    %954 = vmatpush.msra.mxu0 %v893
    %955 = vmatmul.f32.gmra.mxu0 %v937
    %v956 = vpop.f32.mrf.mxu0
    %v957 = vadd.f32 %v935, %v956
    %958 = vdwg.mxu0
    %v959 = vmax.f32 %v957, 0.0
    %v960 = vperm.slane %v904, 0
    %v962 = vsel %vm911, %v959, 0
    %964 = vmatpush.msra.mxu0 0.0
    %965 = vmatpush.msra.mxu0 0.0
    %966 = vmatpush.msra.mxu0 0.0
    %967 = vmatpush.msra.mxu0 0.0
    %968 = vmatpush.msra.mxu0 0.0
    %969 = vmatpush.msra.mxu0 0.0
    %970 = vmatpush.msra.mxu0 0.0
    %971 = vmatpush.msra.mxu0 0.0
    %972 = vmatpush.msra.mxu0 0.0
    %973 = vmatpush.msra.mxu0 0.0
    %974 = vmatpush.msra.mxu0 0.0
    %975 = vmatpush.msra.mxu0 0.0
    %976 = vmatpush.msra.mxu0 %v901
    %977 = vmatpush.msra.mxu0 %v900
    %978 = vmatpush.msra.mxu0 %v899
    %979 = vmatpush.msra.mxu0 %v898
    %980 = vmatmul.f32.gmra.mxu0 %v962
    %v981 = vpop.f32.mrf.mxu0
    %v982 = vadd.f32 %v960, %v981
    %983 = vdwg.mxu0
    %vm984 = vcmask 9216
    %985 = vst.msk [vmem:[#allocation2] sm:$0x3] %vm984, %v982
    // Predicated region
    $region41: #{tpu_custom_call.1} parent=1 // pred_check
      _
    $region42: #{tpu_custom_call.1} parent=1 // pred_check_branch
      %987 = sbr.rel (0) target = $region44
    $region43: #{tpu_custom_call.1} parent=1 // pred_region
      %989 = vsyncadd [#allocation3], 0
      %s991 = sshll.u32 [#allocation2], 4
      %s992 = int_to_ptr.vmem [resolvable:$true] %s991
      %s993 = sshll.u32 %s8, 4
      %s994 = int_to_ptr.hbm [resolvable:$true] %s993
      %996 = dma.vmem_to_hbm [thread:$0]  %s992, 32, %s994, [#allocation3]
    $region44: #{tpu_custom_call.1} parent=1 // pred_fallthru
      _
    // Predicated region
    $region45: #{tpu_custom_call.1} parent=1 // pred_check
      _
    $region46: #{tpu_custom_call.1} parent=1 // pred_check_branch
      %998 = sbr.rel (0) target = $region48
    $region47: #{tpu_custom_call.1} parent=1 // pred_region
      %1000 = dma.done [#allocation3], 32
    $region48: #{tpu_custom_call.1} parent=1 // pred_fallthru
      _
    %1001 = vsyncpa [#allocation3], 1

</llo_original>
